<compile_context>
chip_gen: v7x
topology: tpu7x:2x2x1
jax: 0.10.0
libtpu: 0.0.40
codegen_flags: <defaults>
</compile_context>

<pallas_src>
import jax
import jax.numpy as jnp
from jax.experimental import pallas as pl
from jax.experimental.pallas import tpu as pltpu


def _emk_kernel(x_ref, w_ref, b_ref, o_ref):
    # x_ref : (tile_t, C)       current (batch, time-tile) slab of x
    # w_ref : (C, C*F)          block-diagonal weight (resident)
    # b_ref : (1, C*F)          flattened bias (resident)
    # o_ref : (tile_t, C*F)     lane-dense output tile
    y = jnp.dot(
        x_ref[...],
        w_ref[...],
        preferred_element_type=jnp.float32,
        precision=jax.lax.Precision.HIGHEST,  # keep full f32 accuracy on MXU
    )
    o_ref[...] = (y + b_ref[...]).astype(o_ref.dtype)


def _pick_tile_t(T, CF, itemsize, target_bytes):
    """Largest time tile (multiple of 8, dividing T) whose output tile fits the budget."""
    if T * CF * itemsize <= target_bytes:
        return T
    max_rows = max(8, target_bytes // (CF * itemsize))
    t = (max_rows // 8) * 8
    while t >= 8:
        if T % t == 0:
            return t
        t -= 8
    return T  # fallback: no nice divisor, use the full slab


def evidence_machine_kernel(x, c_weight, c_bias, *, tile_t=None,
                            out_tile_budget_bytes=4 << 20):
    """x: (B, T, C) f32; c_weight/c_bias: (C, F) f32 -> (B, T, C, F) f32."""
    B, T, C = x.shape
    Cw, F = c_weight.shape
    assert Cw == C and c_bias.shape == (C, F)
    CF = C * F
    dtype = x.dtype
    itemsize = jnp.dtype(dtype).itemsize

    if tile_t is None:
        tile_t = _pick_tile_t(T, CF, itemsize, out_tile_budget_bytes)
    assert T % tile_t == 0
    grid = (B, T // tile_t)

    # Block-diagonal weight: W_bd[c', c*F + f] = c_weight[c, f] if c' == c else 0
    eye = jnp.eye(C, dtype=dtype)
    w_bd = (eye[:, :, None] * c_weight[None, :, :].astype(dtype)).reshape(C, CF)
    b_flat = c_bias.astype(dtype).reshape(1, CF)

    # VMEM budget: double-buffered output + x tiles plus the (tiny) resident weights.
    per_step_bytes = 2 * (tile_t * CF + tile_t * C) * itemsize \
        + 2 * (C * CF + CF) * itemsize
    vmem_limit = int(min(max(32 << 20, 2 * per_step_bytes), 100 << 20))

    out_flat = pl.pallas_call(
        _emk_kernel,
        out_shape=jax.ShapeDtypeStruct((B, T, CF), dtype),
        grid=grid,
        in_specs=[
            # Squeeze the unit batch dim: kernel sees a (tile_t, C) ref.
            pl.BlockSpec((None, tile_t, C), lambda b, t: (b, t, 0)),
            # Weight / bias: constant block index -> fetched once, stays resident.
            pl.BlockSpec((C, CF), lambda b, t: (0, 0)),
            pl.BlockSpec((1, CF), lambda b, t: (0, 0)),
        ],
        out_specs=pl.BlockSpec((None, tile_t, CF), lambda b, t: (b, t, 0)),
        compiler_params=pltpu.CompilerParams(
            dimension_semantics=("parallel", "parallel"),
            vmem_limit_bytes=vmem_limit,
        ),
    )(x, w_bd, b_flat)

    # Free relayout at the HBM level: (B, T, C*F) -> (B, T, C, F).
    return out_flat.reshape(B, T, C, F)


def reference(x, c_weight, c_bias):
    # Pure-JAX reference matching torch.einsum('btc,cf->btcf', x, w) + b
    return jnp.einsum("btc,cf->btcf", x, c_weight) + c_bias[None, None, :, :]


if __name__ == "__main__":
    # Module hyperparameters: C channels, F exponent -> feature dim 2**F
    B, T, C = 2, 8, 4
    F_exp = 5
    F = 2 ** F_exp  # 32  (C*F = 128 -> exactly one full lane group)

    key = jax.random.PRNGKey(0)
    kx, kw, kb = jax.random.split(key, 3)

    x = jax.random.normal(kx, (B, T, C), dtype=jnp.float32)
    c_weight = jax.random.normal(kw, (C, F), dtype=jnp.float32)  # ~ torch.randn(C, 2**F)
    c_bias = jax.random.normal(kb, (C, F), dtype=jnp.float32)

    out = evidence_machine_kernel(x, c_weight, c_bias)
    out = jax.block_until_ready(out)

    ref = reference(x, c_weight, c_bias)
    assert out.shape == (B, T, C, F)
    assert jnp.allclose(out, ref, atol=1e-5, rtol=1e-5), "mismatch vs reference"

    print("KERNEL_OK")
</pallas_src>

<mosaic_0001>
module attributes {stable_mosaic.version = 11 : i64} {
  func.func @_emk_kernel(%arg0: i32, %arg1: i32, %arg2: memref<1x8x4xf32, #tpu.memory_space<vmem>>, %arg3: memref<4x128xf32, #tpu.memory_space<vmem>>, %arg4: memref<1x128xf32, #tpu.memory_space<vmem>>, %arg5: memref<1x8x128xf32, #tpu.memory_space<vmem>>) attributes {dimension_semantics = [#tpu.dimension_semantics<parallel>, #tpu.dimension_semantics<parallel>], iteration_bounds = array<i64: 2, 1>, scalar_prefetch = 0 : i64, scratch_operands = 0 : i64, tpu.core_type = #tpu.core_type<tc>, window_params = [{transform_indices = @transform_0, window_bounds = array<i64: 1, 8, 4>}, {pipeline_mode = #tpu.pipeline_mode<synchronous>, transform_indices = @transform_1, window_bounds = array<i64: 4, 128>}, {pipeline_mode = #tpu.pipeline_mode<synchronous>, transform_indices = @transform_2, window_bounds = array<i64: 1, 128>}, {transform_indices = @transform_3, window_bounds = array<i64: 1, 8, 128>}]} {
    %c0 = arith.constant 0 : index
    %c0_0 = arith.constant 0 : index
    %c0_1 = arith.constant 0 : index
    %0 = vector.load %arg2[%c0, %c0_0, %c0_1] : memref<1x8x4xf32, #tpu.memory_space<vmem>>, vector<1x8x4xf32>
    %1 = vector.shape_cast %0 : vector<1x8x4xf32> to vector<8x4xf32>
    %c0_2 = arith.constant 0 : index
    %c0_3 = arith.constant 0 : index
    %2 = vector.load %arg3[%c0_2, %c0_3] : memref<4x128xf32, #tpu.memory_space<vmem>>, vector<4x128xf32>
    %cst = arith.constant dense<0.000000e+00> : vector<8x128xf32>
    %3 = tpu.matmul %1, %2, %cst {dimension_numbers = #tpu.dot_dimension_numbers<[1], [0], [0], [1], [0, 0, 1, 1], [], []>, precision = #tpu.contract_precision<fp32>} : vector<8x4xf32>, vector<4x128xf32>, vector<8x128xf32> -> vector<8x128xf32>
    %c0_4 = arith.constant 0 : index
    %c0_5 = arith.constant 0 : index
    %4 = vector.load %arg4[%c0_4, %c0_5] : memref<1x128xf32, #tpu.memory_space<vmem>>, vector<1x128xf32>
    %5 = vector.broadcast %4 : vector<1x128xf32> to vector<8x128xf32>
    %6 = arith.addf %3, %5 : vector<8x128xf32>
    %c0_6 = arith.constant 0 : index
    %c0_7 = arith.constant 0 : index
    %c0_8 = arith.constant 0 : index
    %7 = vector.load %arg5[%c0_6, %c0_7, %c0_8] : memref<1x8x128xf32, #tpu.memory_space<vmem>>, vector<1x8x128xf32>
    %8 = vector.shape_cast %7 : vector<1x8x128xf32> to vector<8x128xf32>
    %9 = vector.shape_cast %6 : vector<8x128xf32> to vector<1x8x128xf32>
    tpu.vector_store %arg5[%c0_6, %c0_7, %c0_8], %9 {strides = array<i32>} : memref<1x8x128xf32, #tpu.memory_space<vmem>>, vector<1x8x128xf32>,
    return
  }
  func.func @transform_0(%arg0: i32, %arg1: i32) -> (i32, i32, i32) {
    %c0_i32 = arith.constant 0 : i32
    %c0_i32_0 = arith.constant 0 : i32
    return %arg0, %arg1, %c0_i32 : i32, i32, i32
  }
  func.func @transform_1(%arg0: i32, %arg1: i32) -> (i32, i32) {
    %c0_i32 = arith.constant 0 : i32
    %c0_i32_0 = arith.constant 0 : i32
    %c0_i32_1 = arith.constant 0 : i32
    return %c0_i32, %c0_i32_0 : i32, i32
  }
  func.func @transform_2(%arg0: i32, %arg1: i32) -> (i32, i32) {
    %c0_i32 = arith.constant 0 : i32
    %c0_i32_0 = arith.constant 0 : i32
    %c0_i32_1 = arith.constant 0 : i32
    return %c0_i32, %c0_i32_0 : i32, i32
  }
  func.func @transform_3(%arg0: i32, %arg1: i32) -> (i32, i32, i32) {
    %c0_i32 = arith.constant 0 : i32
    %c0_i32_0 = arith.constant 0 : i32
    return %arg0, %arg1, %c0_i32 : i32, i32, i32
  }
}

</mosaic_0001>

<llo_original>
// kernel: tpu_custom_call.1
$region0: #{tpu_custom_call.1}
  #allocation0 [shape = 'u32[]', space=smem, size = 0x4, offset = 0x4, fixed_abs, tag = 'smem constant byte address 0x4 - core index']
  #allocation1 [shape = 'u32[144,128]{1,0:T(1,128)}', space=vmem, size = 0x12000, scoped, tag = 'internal scratch']
  %s0 = inlined_call_operand.vmem [shape: f32[2,8,4], index: 0, kind: input, shape index: {}]
  %s1 = inlined_call_operand.vmem [shape: f32[4,128], index: 1, kind: input, shape index: {}]
  %s2 = inlined_call_operand.vmem [shape: f32[1,128], index: 2, kind: input, shape index: {}]
  %s3 = inlined_call_operand.hbm [shape: f32[2,8,128], index: 3, kind: output, shape index: {}]
  %s4 = sld [smem:[#allocation0]]
  $region45: #{tpu_custom_call.1} parent=0
    _
  %s6 = ssub.s32 1, %s4
  %s7 = scalar_select 0, %s6, %s4
  $region1: #{tpu_custom_call.1} parent=0
    #allocation2 [shape = 'u8[8192]{0}', space=vmem, size = 0x2000, scoped, tag = 'output window, operand 0']
    #allocation3 [shape = 's32[2]{0}', space=sflag, size = 0x8, scoped, tag = 'scoped memory for tpu_custom_call.1']
    %8 = vsyncpa [#allocation3], 0
    %s9 = scalar_lea.sflag [#allocation3], 1
    %10 = vsyncpa %s9, 0
    loop: start=0, step=1, limit=4
    $region2: #{tpu_custom_call.1} parent=1 // loop_pre_header
      _
    $region3: #{tpu_custom_call.1} parent=1 // loop_header
      %s12 = sphi 0, %s16
      %p13 = scmp.ge.s32.totalorder %s12, 4
      %s19 = sphi 0, %s31
      %s20 = sphi 0, %s27
      %s21 = sphi 0, %s19
      %s22 = sphi 0, %s20
      %s23 = sphi 0, %s21
      %s24 = sphi 0, %s22
      %s36 = sphi 0, %s38
      %s39 = sphi 0, %s36
      %s40 = sphi 0, %s39
      %s56 = sphi 0, %s40
      %s60 = sphi 0, %s60
      %s62 = sphi 0, %s60
      %s63 = sphi 0, %s62
      %s77 = sphi 0, %s63
      %s81 = sphi 0, %s81
      %s83 = sphi 0, %s81
      %s84 = sphi 0, %s83
      %s98 = sphi 0, %s84
      %s106 = sphi 0, %s108
      %s109 = sphi 0, %s106
      %s110 = sphi 0, %s109
      %s126 = sphi 0, %s110
    $region4: #{tpu_custom_call.1} parent=1 // loop_header_branch
      %15 = sbr.rel (%p13) target = $region8
    $region5: #{tpu_custom_call.1} parent=1 // loop_body
      %s17 = ssub.s32 %s12, 1
      %s18 = ssub.s32 %s12, 2
      %s25 = sadd.s32 1, %s20
      %p26 = scmp.ge.s32.totalorder %s25, 1
      %s27 = scalar_select %p26, 0, %s25
      %s28 = sadd.s32 1, %s19
      %s29 = scalar_select %p26, %s28, %s19
      %p30 = scmp.ge.s32.totalorder %s29, 2
      %s31 = scalar_select %p30, 0, %s29
      %s32 = ssub.s32 %s19, %s31
      %s33 = ssub.s32 %s20, %s27
      %s34 = sor.u32 %s32, %s33
      %p35 = scmp.eq.s32.totalorder %s34, 0
      %s37 = sadd.s32 %s36, 1
      %s38 = scalar_select %p35, %s36, %s37
      %p41 = pneg %p35
      %p42 = scmp.eq.s32.totalorder %s12, 1
      %p43 = por %p41, %p42
      %p44 = scmp.ne.s32.totalorder %s36, %s39
      %p45 = scmp.eq.s32.totalorder %s12, 0
      %p46 = por %p44, %p45
      %p47 = scmp.ne.s32.totalorder %s36, %s39
      %p48 = scmp.eq.s32.totalorder %s17, 1
      %p49 = por %p47, %p48
      %p50 = scmp.ne.s32.totalorder %s39, %s40
      %p51 = scmp.eq.s32.totalorder %s17, 0
      %p52 = por %p50, %p51
      %p53 = scmp.ne.s32.totalorder %s39, %s40
      %p54 = scmp.eq.s32.totalorder %s18, 1
      %p55 = por %p53, %p54
      %p57 = scmp.ne.s32.totalorder %s40, %s56
      %p58 = scmp.eq.s32.totalorder %s18, 0
      %p59 = por %p57, %p58
      %s61 = sadd.s32 %s60, 1
      %p64 = scmp.eq.s32.totalorder %s12, 1
      %p65 = scmp.ne.s32.totalorder %s60, %s62
      %p66 = scmp.eq.s32.totalorder %s12, 0
      %p67 = por %p65, %p66
      %p68 = scmp.ne.s32.totalorder %s60, %s62
      %p69 = scmp.eq.s32.totalorder %s17, 1
      %p70 = por %p68, %p69
      %p71 = scmp.ne.s32.totalorder %s62, %s63
      %p72 = scmp.eq.s32.totalorder %s17, 0
      %p73 = por %p71, %p72
      %p74 = scmp.ne.s32.totalorder %s62, %s63
      %p75 = scmp.eq.s32.totalorder %s18, 1
      %p76 = por %p74, %p75
      %p78 = scmp.ne.s32.totalorder %s63, %s77
      %p79 = scmp.eq.s32.totalorder %s18, 0
      %p80 = por %p78, %p79
      %s82 = sadd.s32 %s81, 1
      %p85 = scmp.eq.s32.totalorder %s12, 1
      %p86 = scmp.ne.s32.totalorder %s81, %s83
      %p87 = scmp.eq.s32.totalorder %s12, 0
      %p88 = por %p86, %p87
      %p89 = scmp.ne.s32.totalorder %s81, %s83
      %p90 = scmp.eq.s32.totalorder %s17, 1
      %p91 = por %p89, %p90
      %p92 = scmp.ne.s32.totalorder %s83, %s84
      %p93 = scmp.eq.s32.totalorder %s17, 0
      %p94 = por %p92, %p93
      %p95 = scmp.ne.s32.totalorder %s83, %s84
      %p96 = scmp.eq.s32.totalorder %s18, 1
      %p97 = por %p95, %p96
      %p99 = scmp.ne.s32.totalorder %s84, %s98
      %p100 = scmp.eq.s32.totalorder %s18, 0
      %p101 = por %p99, %p100
      %s102 = ssub.s32 %s19, %s31
      %s103 = ssub.s32 %s20, %s27
      %s104 = sor.u32 %s102, %s103
      %p105 = scmp.eq.s32.totalorder %s104, 0
      %s107 = sadd.s32 %s106, 1
      %s108 = scalar_select %p105, %s106, %s107
      %p111 = pneg %p105
      %p112 = scmp.eq.s32.totalorder %s12, 1
      %p113 = por %p111, %p112
      %p114 = scmp.ne.s32.totalorder %s106, %s109
      %p115 = scmp.eq.s32.totalorder %s12, 0
      %p116 = por %p114, %p115
      %p117 = scmp.ne.s32.totalorder %s106, %s109
      %p118 = scmp.eq.s32.totalorder %s17, 1
      %p119 = por %p117, %p118
      %p120 = scmp.ne.s32.totalorder %s109, %s110
      %p121 = scmp.eq.s32.totalorder %s17, 0
      %p122 = por %p120, %p121
      %p123 = scmp.ne.s32.totalorder %s109, %s110
      %p124 = scmp.eq.s32.totalorder %s18, 1
      %p125 = por %p123, %p124
      %p127 = scmp.ne.s32.totalorder %s110, %s126
      %p128 = scmp.eq.s32.totalorder %s18, 0
      %p129 = por %p127, %p128
      %p130 = scmp.le.s32.totalorder 1, %s12
      %p131 = scmp.lt.s32.totalorder %s12, 3
      %p132 = pnand %p130, %p131
      %p133 = pneg %p132
      // Predicated region
      $region9: #{tpu_custom_call.1} parent=5 // pred_check
        _
      $region10: #{tpu_custom_call.1} parent=5 // pred_check_branch
        %135 = sbr.rel (%p132) target = $region12
      $region11: #{tpu_custom_call.1} parent=5 // pred_region
        %s136 = ssub.s32 %s12, 1
        // Predicated region
        $region13: #{tpu_custom_call.1} parent=11 // pred_check
          %p137 = pneg %p73
        $region14: #{tpu_custom_call.1} parent=11 // pred_check_branch
          %139 = sbr.rel (%p137) target = $region16
        $region15: #{tpu_custom_call.1} parent=11 // pred_region
          _
        $region16: #{tpu_custom_call.1} parent=11 // pred_fallthru
          _
        // Predicated region
        $region17: #{tpu_custom_call.1} parent=11 // pred_check
          %p140 = pneg %p94
        $region18: #{tpu_custom_call.1} parent=11 // pred_check_branch
          %142 = sbr.rel (%p140) target = $region20
        $region19: #{tpu_custom_call.1} parent=11 // pred_region
          _
        $region20: #{tpu_custom_call.1} parent=11 // pred_fallthru
          _
      $region12: #{tpu_custom_call.1} parent=5 // pred_fallthru
        _
      %p143 = scmp.lt.s32.totalorder %s12, 2
      // Predicated region
      $region21: #{tpu_custom_call.1} parent=5 // pred_check
        %p144 = pneg %p143
      $region22: #{tpu_custom_call.1} parent=5 // pred_check_branch
        %146 = sbr.rel (%p144) target = $region24
      $region23: #{tpu_custom_call.1} parent=5 // pred_region
        // Predicated region
        $region25: #{tpu_custom_call.1} parent=23 // pred_check
          %p147 = pneg %p46
        $region26: #{tpu_custom_call.1} parent=23 // pred_check_branch
          %149 = sbr.rel (%p147) target = $region28
        $region27: #{tpu_custom_call.1} parent=23 // pred_region
          %p150 = scmp.lt.s32.totalorder %s19, 1
          %s151 = scalar_select %p150, %s19, 1
          %p152 = scmp.lt.s32.totalorder %s20, 0
          %s153 = scalar_select %p152, %s20, 0
          %s154 = sadd.s32 %s153, %s151
          %s155 = smul.addr %s154, 8
          %s156 = scalar_lea.vmem %s0, %s155
        $region28: #{tpu_custom_call.1} parent=23 // pred_fallthru
          _
      $region24: #{tpu_custom_call.1} parent=5 // pred_fallthru
        _
      %p157 = scmp.le.s32.totalorder 1, %s12
      %p158 = scmp.lt.s32.totalorder %s12, 3
      %p159 = pnand %p157, %p158
      %p160 = pneg %p159
      // Predicated region
      $region29: #{tpu_custom_call.1} parent=5 // pred_check
        _
      $region30: #{tpu_custom_call.1} parent=5 // pred_check_branch
        %162 = sbr.rel (%p159) target = $region32
      $region31: #{tpu_custom_call.1} parent=5 // pred_region
        %s163 = ssub.s32 %s12, 1
        %p164 = scmp.lt.s32.totalorder %s21, 1
        %s165 = scalar_select %p164, %s21, 1
        %p166 = scmp.lt.s32.totalorder %s22, 0
        %s167 = scalar_select %p166, %s22, 0
        %s168 = sadd.s32 %s167, %s165
        %s169 = smul.addr %s168, 8
        %s170 = scalar_lea.vmem %s0, %s169
        %p171 = pneg %p52
        %p172 = pneg %p49
        %p173 = pneg %p73
        %p174 = pneg %p70
        %p175 = pneg %p94
        %p176 = pneg %p91
        %p177 = pneg %p122
        %p178 = pneg %p119
        %s179 = sand.u32 %s109, 1
        %s180 = scalar_lea.sflag [#allocation3], %s179
        %s181 = sand.u32 %s109, 1
        %s182 = smul.addr %s181, 8
        %s183 = scalar_lea.vmem [#allocation2], %s182
        %p184 = scmp.lt.s32.totalorder %s21, 1
        %s185 = scalar_select %p184, %s21, 1
        %p186 = scmp.lt.s32.totalorder %s22, 0
        %s187 = scalar_select %p186, %s22, 0
        %s188 = sadd.s32 %s187, %s185
        %s189 = smul.addr %s188, 8
        %s190 = scalar_lea.vmem %s0, %s189
        %v191 = vld [vmem:[%s190] sm:$0xff]
        %v192 = vld [vmem:[%s1] sm:$0xf]
        %v193 = vld [vmem:[%s2] sm:$0x1]
        %v195 = vlaneseq
        %v196 = vshrl.u32 %v195, 7
        %v197 = vsub.s32 0, %v196
        %v198 = vrot.slane %v193, %v197
        %vm200 = vcmask 31744
        %v202 = vsel %vm200, %v191, 0
        %vm204 = vcmask 1043456
        %v206 = vsel %vm204, %v192, 0
        %208 = vmatprep.subr.mxu0 0.0
        %v209 = vand.u32 %v206, 4294901760
        %210 = vmatpush1.msra.mxu0 %v209
        %211 = vmatprep.subr.mxu0 0.0
        %212 = vmatpush1.msra.mxu0 0.0
        %213 = vmatprep.subr.mxu0 0.0
        %214 = vmatpush1.msra.mxu0 0.0
        %215 = vmatprep.subr.mxu0 0.0
        %216 = vmatpush1.msra.mxu0 0.0
        %217 = vmatprep.subr.mxu0 0.0
        %218 = vmatpush1.msra.mxu0 0.0
        %219 = vmatprep.subr.mxu0 0.0
        %220 = vmatpush1.msra.mxu0 0.0
        %221 = vmatprep.subr.mxu0 0.0
        %222 = vmatpush1.msra.mxu0 0.0
        %223 = vmatprep.subr.mxu0 0.0
        %224 = vmatpush1.msra.mxu0 0.0
        %225 = vmatprep.subr.mxu0 0.0
        %226 = vmatpush1.msra.mxu0 0.0
        %227 = vmatprep.subr.mxu0 0.0
        %228 = vmatpush1.msra.mxu0 0.0
        %229 = vmatprep.subr.mxu0 0.0
        %230 = vmatpush1.msra.mxu0 0.0
        %231 = vmatprep.subr.mxu0 0.0
        %232 = vmatpush1.msra.mxu0 0.0
        %233 = vmatprep.subr.mxu0 0.0
        %234 = vmatpush1.msra.mxu0 0.0
        %235 = vmatprep.subr.mxu0 0.0
        %236 = vmatpush1.msra.mxu0 0.0
        %237 = vmatprep.subr.mxu0 0.0
        %238 = vmatpush1.msra.mxu0 0.0
        %239 = vmatprep.subr.mxu0 0.0
        %240 = vmatpush1.msra.mxu0 0.0
        %241 = vmatprep.subr.mxu0 0.0
        %242 = vmatpush1.msra.mxu0 0.0
        %243 = vmatprep.subr.mxu0 0.0
        %244 = vmatpush1.msra.mxu0 0.0
        %245 = vmatprep.subr.mxu0 0.0
        %246 = vmatpush1.msra.mxu0 0.0
        %247 = vmatprep.subr.mxu0 0.0
        %248 = vmatpush1.msra.mxu0 0.0
        %249 = vmatprep.subr.mxu0 0.0
        %250 = vmatpush1.msra.mxu0 0.0
        %251 = vmatprep.subr.mxu0 0.0
        %252 = vmatpush1.msra.mxu0 0.0
        %253 = vmatprep.subr.mxu0 0.0
        %254 = vmatpush1.msra.mxu0 0.0
        %255 = vmatprep.subr.mxu0 0.0
        %256 = vmatpush1.msra.mxu0 0.0
        %257 = vmatprep.subr.mxu0 0.0
        %258 = vmatpush1.msra.mxu0 0.0
        %259 = vmatprep.subr.mxu0 0.0
        %260 = vmatpush1.msra.mxu0 0.0
        %261 = vmatprep.subr.mxu0 0.0
        %262 = vmatpush1.msra.mxu0 0.0
        %263 = vmatprep.subr.mxu0 0.0
        %264 = vmatpush1.msra.mxu0 0.0
        %265 = vmatprep.subr.mxu0 0.0
        %266 = vmatpush1.msra.mxu0 0.0
        %267 = vmatprep.subr.mxu0 0.0
        %268 = vmatpush1.msra.mxu0 0.0
        %269 = vmatprep.subr.mxu0 0.0
        %270 = vmatpush1.msra.mxu0 0.0
        %271 = vmatprep.subr.mxu0 0.0
        %272 = vmatpush1.msra.mxu0 0.0
        %273 = vmatprep.mubr.f32.mxu0 0.0
        %v274 = vand.u32 %v202, 4294901760
        %v275 = vsub.f32 %v202, %v274
        %v276 = vand.u32 %v275, 4294901760
        %v277 = vsub.f32 %v275, %v276
        %v278 = vand.u32 %v277, 4294901760
        %279 = vmatmul.mubr.f32.gmra.mrb[0].mxu0 %v278
        %v280 = vpop.f32.mrb[0].mxu0
        %v281 = vadd.f32 %v198, %v280
        %v282 = vpop.f32.mrb[0].mxu0
        %283 = vdwg.mxu0
        %284 = vmatprep.subr.mxu0 0.0
        %v285 = vand.u32 %v206, 4294901760
        %v286 = vsub.f32 %v206, %v285
        %v287 = vand.u32 %v286, 4294901760
        %v288 = vsub.f32 %v286, %v287
        %v289 = vand.u32 %v288, 4294901760
        %290 = vmatpush1.msra.mxu0 %v289
        %291 = vmatprep.subr.mxu0 0.0
        %292 = vmatpush1.msra.mxu0 0.0
        %293 = vmatprep.subr.mxu0 0.0
        %294 = vmatpush1.msra.mxu0 0.0
        %295 = vmatprep.subr.mxu0 0.0
        %296 = vmatpush1.msra.mxu0 0.0
        %297 = vmatprep.subr.mxu0 0.0
        %298 = vmatpush1.msra.mxu0 0.0
        %299 = vmatprep.subr.mxu0 0.0
        %300 = vmatpush1.msra.mxu0 0.0
        %301 = vmatprep.subr.mxu0 0.0
        %302 = vmatpush1.msra.mxu0 0.0
        %303 = vmatprep.subr.mxu0 0.0
        %304 = vmatpush1.msra.mxu0 0.0
        %305 = vmatprep.subr.mxu0 0.0
        %306 = vmatpush1.msra.mxu0 0.0
        %307 = vmatprep.subr.mxu0 0.0
        %308 = vmatpush1.msra.mxu0 0.0
        %309 = vmatprep.subr.mxu0 0.0
        %310 = vmatpush1.msra.mxu0 0.0
        %311 = vmatprep.subr.mxu0 0.0
        %312 = vmatpush1.msra.mxu0 0.0
        %313 = vmatprep.subr.mxu0 0.0
        %314 = vmatpush1.msra.mxu0 0.0
        %315 = vmatprep.subr.mxu0 0.0
        %316 = vmatpush1.msra.mxu0 0.0
        %317 = vmatprep.subr.mxu0 0.0
        %318 = vmatpush1.msra.mxu0 0.0
        %319 = vmatprep.subr.mxu0 0.0
        %320 = vmatpush1.msra.mxu0 0.0
        %321 = vmatprep.subr.mxu0 0.0
        %322 = vmatpush1.msra.mxu0 0.0
        %323 = vmatprep.subr.mxu0 0.0
        %324 = vmatpush1.msra.mxu0 0.0
        %325 = vmatprep.subr.mxu0 0.0
        %326 = vmatpush1.msra.mxu0 0.0
        %327 = vmatprep.subr.mxu0 0.0
        %328 = vmatpush1.msra.mxu0 0.0
        %329 = vmatprep.subr.mxu0 0.0
        %330 = vmatpush1.msra.mxu0 0.0
        %331 = vmatprep.subr.mxu0 0.0
        %332 = vmatpush1.msra.mxu0 0.0
        %333 = vmatprep.subr.mxu0 0.0
        %334 = vmatpush1.msra.mxu0 0.0
        %335 = vmatprep.subr.mxu0 0.0
        %336 = vmatpush1.msra.mxu0 0.0
        %337 = vmatprep.subr.mxu0 0.0
        %338 = vmatpush1.msra.mxu0 0.0
        %339 = vmatprep.subr.mxu0 0.0
        %340 = vmatpush1.msra.mxu0 0.0
        %341 = vmatprep.subr.mxu0 0.0
        %342 = vmatpush1.msra.mxu0 0.0
        %343 = vmatprep.subr.mxu0 0.0
        %344 = vmatpush1.msra.mxu0 0.0
        %345 = vmatprep.subr.mxu0 0.0
        %346 = vmatpush1.msra.mxu0 0.0
        %347 = vmatprep.subr.mxu0 0.0
        %348 = vmatpush1.msra.mxu0 0.0
        %349 = vmatprep.subr.mxu0 0.0
        %350 = vmatpush1.msra.mxu0 0.0
        %351 = vmatprep.subr.mxu0 0.0
        %352 = vmatpush1.msra.mxu0 0.0
        %353 = vmatprep.mubr.f32.mxu0 0.0
        %v354 = vand.u32 %v202, 4294901760
        %355 = vmatmul.mubr.f32.gmra.mrb[0].mxu0 %v354
        %v356 = vpop.f32.mrb[0].mxu0
        %v357 = vadd.f32 %v281, %v356
        %v358 = vpop.f32.mrb[0].mxu0
        %359 = vdwg.mxu0
        %360 = vmatprep.subr.mxu0 0.0
        %v361 = vand.u32 %v206, 4294901760
        %v362 = vsub.f32 %v206, %v361
        %363 = vmatpush1.msra.mxu0 %v362
        %364 = vmatprep.subr.mxu0 0.0
        %365 = vmatpush1.msra.mxu0 0.0
        %366 = vmatprep.subr.mxu0 0.0
        %367 = vmatpush1.msra.mxu0 0.0
        %368 = vmatprep.subr.mxu0 0.0
        %369 = vmatpush1.msra.mxu0 0.0
        %370 = vmatprep.subr.mxu0 0.0
        %371 = vmatpush1.msra.mxu0 0.0
        %372 = vmatprep.subr.mxu0 0.0
        %373 = vmatpush1.msra.mxu0 0.0
        %374 = vmatprep.subr.mxu0 0.0
        %375 = vmatpush1.msra.mxu0 0.0
        %376 = vmatprep.subr.mxu0 0.0
        %377 = vmatpush1.msra.mxu0 0.0
        %378 = vmatprep.subr.mxu0 0.0
        %379 = vmatpush1.msra.mxu0 0.0
        %380 = vmatprep.subr.mxu0 0.0
        %381 = vmatpush1.msra.mxu0 0.0
        %382 = vmatprep.subr.mxu0 0.0
        %383 = vmatpush1.msra.mxu0 0.0
        %384 = vmatprep.subr.mxu0 0.0
        %385 = vmatpush1.msra.mxu0 0.0
        %386 = vmatprep.subr.mxu0 0.0
        %387 = vmatpush1.msra.mxu0 0.0
        %388 = vmatprep.subr.mxu0 0.0
        %389 = vmatpush1.msra.mxu0 0.0
        %390 = vmatprep.subr.mxu0 0.0
        %391 = vmatpush1.msra.mxu0 0.0
        %392 = vmatprep.subr.mxu0 0.0
        %393 = vmatpush1.msra.mxu0 0.0
        %394 = vmatprep.subr.mxu0 0.0
        %395 = vmatpush1.msra.mxu0 0.0
        %396 = vmatprep.subr.mxu0 0.0
        %397 = vmatpush1.msra.mxu0 0.0
        %398 = vmatprep.subr.mxu0 0.0
        %399 = vmatpush1.msra.mxu0 0.0
        %400 = vmatprep.subr.mxu0 0.0
        %401 = vmatpush1.msra.mxu0 0.0
        %402 = vmatprep.subr.mxu0 0.0
        %403 = vmatpush1.msra.mxu0 0.0
        %404 = vmatprep.subr.mxu0 0.0
        %405 = vmatpush1.msra.mxu0 0.0
        %406 = vmatprep.subr.mxu0 0.0
        %407 = vmatpush1.msra.mxu0 0.0
        %408 = vmatprep.subr.mxu0 0.0
        %409 = vmatpush1.msra.mxu0 0.0
        %410 = vmatprep.subr.mxu0 0.0
        %411 = vmatpush1.msra.mxu0 0.0
        %412 = vmatprep.subr.mxu0 0.0
        %413 = vmatpush1.msra.mxu0 0.0
        %414 = vmatprep.subr.mxu0 0.0
        %415 = vmatpush1.msra.mxu0 0.0
        %416 = vmatprep.subr.mxu0 0.0
        %417 = vmatpush1.msra.mxu0 0.0
        %418 = vmatprep.subr.mxu0 0.0
        %419 = vmatpush1.msra.mxu0 0.0
        %420 = vmatprep.subr.mxu0 0.0
        %421 = vmatpush1.msra.mxu0 0.0
        %422 = vmatprep.subr.mxu0 0.0
        %423 = vmatpush1.msra.mxu0 0.0
        %424 = vmatprep.subr.mxu0 0.0
        %425 = vmatpush1.msra.mxu0 0.0
        %426 = vmatprep.mubr.f32.mxu0 0.0
        %v427 = vand.u32 %v202, 4294901760
        %v428 = vsub.f32 %v202, %v427
        %429 = vmatmul.mubr.f32.gmra.mrb[0].mxu0 %v428
        %v430 = vpop.f32.mrb[0].mxu0
        %v431 = vadd.f32 %v357, %v430
        %v432 = vpop.f32.mrb[0].mxu0
        %433 = vdwg.mxu0
        %434 = vmatprep.subr.mxu0 0.0
        %v435 = vand.u32 %v206, 4294901760
        %436 = vmatpush1.msra.mxu0 %v435
        %437 = vmatprep.subr.mxu0 0.0
        %438 = vmatpush1.msra.mxu0 0.0
        %439 = vmatprep.subr.mxu0 0.0
        %440 = vmatpush1.msra.mxu0 0.0
        %441 = vmatprep.subr.mxu0 0.0
        %442 = vmatpush1.msra.mxu0 0.0
        %443 = vmatprep.subr.mxu0 0.0
        %444 = vmatpush1.msra.mxu0 0.0
        %445 = vmatprep.subr.mxu0 0.0
        %446 = vmatpush1.msra.mxu0 0.0
        %447 = vmatprep.subr.mxu0 0.0
        %448 = vmatpush1.msra.mxu0 0.0
        %449 = vmatprep.subr.mxu0 0.0
        %450 = vmatpush1.msra.mxu0 0.0
        %451 = vmatprep.subr.mxu0 0.0
        %452 = vmatpush1.msra.mxu0 0.0
        %453 = vmatprep.subr.mxu0 0.0
        %454 = vmatpush1.msra.mxu0 0.0
        %455 = vmatprep.subr.mxu0 0.0
        %456 = vmatpush1.msra.mxu0 0.0
        %457 = vmatprep.subr.mxu0 0.0
        %458 = vmatpush1.msra.mxu0 0.0
        %459 = vmatprep.subr.mxu0 0.0
        %460 = vmatpush1.msra.mxu0 0.0
        %461 = vmatprep.subr.mxu0 0.0
        %462 = vmatpush1.msra.mxu0 0.0
        %463 = vmatprep.subr.mxu0 0.0
        %464 = vmatpush1.msra.mxu0 0.0
        %465 = vmatprep.subr.mxu0 0.0
        %466 = vmatpush1.msra.mxu0 0.0
        %467 = vmatprep.subr.mxu0 0.0
        %468 = vmatpush1.msra.mxu0 0.0
        %469 = vmatprep.subr.mxu0 0.0
        %470 = vmatpush1.msra.mxu0 0.0
        %471 = vmatprep.subr.mxu0 0.0
        %472 = vmatpush1.msra.mxu0 0.0
        %473 = vmatprep.subr.mxu0 0.0
        %474 = vmatpush1.msra.mxu0 0.0
        %475 = vmatprep.subr.mxu0 0.0
        %476 = vmatpush1.msra.mxu0 0.0
        %477 = vmatprep.subr.mxu0 0.0
        %478 = vmatpush1.msra.mxu0 0.0
        %479 = vmatprep.subr.mxu0 0.0
        %480 = vmatpush1.msra.mxu0 0.0
        %481 = vmatprep.subr.mxu0 0.0
        %482 = vmatpush1.msra.mxu0 0.0
        %483 = vmatprep.subr.mxu0 0.0
        %484 = vmatpush1.msra.mxu0 0.0
        %485 = vmatprep.subr.mxu0 0.0
        %486 = vmatpush1.msra.mxu0 0.0
        %487 = vmatprep.subr.mxu0 0.0
        %488 = vmatpush1.msra.mxu0 0.0
        %489 = vmatprep.subr.mxu0 0.0
        %490 = vmatpush1.msra.mxu0 0.0
        %491 = vmatprep.subr.mxu0 0.0
        %492 = vmatpush1.msra.mxu0 0.0
        %493 = vmatprep.subr.mxu0 0.0
        %494 = vmatpush1.msra.mxu0 0.0
        %495 = vmatprep.subr.mxu0 0.0
        %496 = vmatpush1.msra.mxu0 0.0
        %497 = vmatprep.subr.mxu0 0.0
        %498 = vmatpush1.msra.mxu0 0.0
        %499 = vmatprep.mubr.f32.mxu0 0.0
        %v500 = vand.u32 %v202, 4294901760
        %v501 = vsub.f32 %v202, %v500
        %v502 = vand.u32 %v501, 4294901760
        %503 = vmatmul.mubr.f32.gmra.mrb[0].mxu0 %v502
        %v504 = vpop.f32.mrb[0].mxu0
        %v505 = vadd.f32 %v431, %v504
        %v506 = vpop.f32.mrb[0].mxu0
        %507 = vdwg.mxu0
        %508 = vmatprep.subr.mxu0 0.0
        %v509 = vand.u32 %v206, 4294901760
        %v510 = vsub.f32 %v206, %v509
        %v511 = vand.u32 %v510, 4294901760
        %512 = vmatpush1.msra.mxu0 %v511
        %513 = vmatprep.subr.mxu0 0.0
        %514 = vmatpush1.msra.mxu0 0.0
        %515 = vmatprep.subr.mxu0 0.0
        %516 = vmatpush1.msra.mxu0 0.0
        %517 = vmatprep.subr.mxu0 0.0
        %518 = vmatpush1.msra.mxu0 0.0
        %519 = vmatprep.subr.mxu0 0.0
        %520 = vmatpush1.msra.mxu0 0.0
        %521 = vmatprep.subr.mxu0 0.0
        %522 = vmatpush1.msra.mxu0 0.0
        %523 = vmatprep.subr.mxu0 0.0
        %524 = vmatpush1.msra.mxu0 0.0
        %525 = vmatprep.subr.mxu0 0.0
        %526 = vmatpush1.msra.mxu0 0.0
        %527 = vmatprep.subr.mxu0 0.0
        %528 = vmatpush1.msra.mxu0 0.0
        %529 = vmatprep.subr.mxu0 0.0
        %530 = vmatpush1.msra.mxu0 0.0
        %531 = vmatprep.subr.mxu0 0.0
        %532 = vmatpush1.msra.mxu0 0.0
        %533 = vmatprep.subr.mxu0 0.0
        %534 = vmatpush1.msra.mxu0 0.0
        %535 = vmatprep.subr.mxu0 0.0
        %536 = vmatpush1.msra.mxu0 0.0
        %537 = vmatprep.subr.mxu0 0.0
        %538 = vmatpush1.msra.mxu0 0.0
        %539 = vmatprep.subr.mxu0 0.0
        %540 = vmatpush1.msra.mxu0 0.0
        %541 = vmatprep.subr.mxu0 0.0
        %542 = vmatpush1.msra.mxu0 0.0
        %543 = vmatprep.subr.mxu0 0.0
        %544 = vmatpush1.msra.mxu0 0.0
        %545 = vmatprep.subr.mxu0 0.0
        %546 = vmatpush1.msra.mxu0 0.0
        %547 = vmatprep.subr.mxu0 0.0
        %548 = vmatpush1.msra.mxu0 0.0
        %549 = vmatprep.subr.mxu0 0.0
        %550 = vmatpush1.msra.mxu0 0.0
        %551 = vmatprep.subr.mxu0 0.0
        %552 = vmatpush1.msra.mxu0 0.0
        %553 = vmatprep.subr.mxu0 0.0
        %554 = vmatpush1.msra.mxu0 0.0
        %555 = vmatprep.subr.mxu0 0.0
        %556 = vmatpush1.msra.mxu0 0.0
        %557 = vmatprep.subr.mxu0 0.0
        %558 = vmatpush1.msra.mxu0 0.0
        %559 = vmatprep.subr.mxu0 0.0
        %560 = vmatpush1.msra.mxu0 0.0
        %561 = vmatprep.subr.mxu0 0.0
        %562 = vmatpush1.msra.mxu0 0.0
        %563 = vmatprep.subr.mxu0 0.0
        %564 = vmatpush1.msra.mxu0 0.0
        %565 = vmatprep.subr.mxu0 0.0
        %566 = vmatpush1.msra.mxu0 0.0
        %567 = vmatprep.subr.mxu0 0.0
        %568 = vmatpush1.msra.mxu0 0.0
        %569 = vmatprep.subr.mxu0 0.0
        %570 = vmatpush1.msra.mxu0 0.0
        %571 = vmatprep.subr.mxu0 0.0
        %572 = vmatpush1.msra.mxu0 0.0
        %573 = vmatprep.subr.mxu0 0.0
        %574 = vmatpush1.msra.mxu0 0.0
        %575 = vmatprep.mubr.f32.mxu0 0.0
        %v576 = vand.u32 %v202, 4294901760
        %577 = vmatmul.mubr.f32.gmra.mrb[0].mxu0 %v576
        %v578 = vpop.f32.mrb[0].mxu0
        %v579 = vadd.f32 %v505, %v578
        %v580 = vpop.f32.mrb[0].mxu0
        %581 = vdwg.mxu0
        %582 = vmatprep.subr.mxu0 0.0
        %v583 = vand.u32 %v206, 4294901760
        %584 = vmatpush1.msra.mxu0 %v583
        %585 = vmatprep.subr.mxu0 0.0
        %586 = vmatpush1.msra.mxu0 0.0
        %587 = vmatprep.subr.mxu0 0.0
        %588 = vmatpush1.msra.mxu0 0.0
        %589 = vmatprep.subr.mxu0 0.0
        %590 = vmatpush1.msra.mxu0 0.0
        %591 = vmatprep.subr.mxu0 0.0
        %592 = vmatpush1.msra.mxu0 0.0
        %593 = vmatprep.subr.mxu0 0.0
        %594 = vmatpush1.msra.mxu0 0.0
        %595 = vmatprep.subr.mxu0 0.0
        %596 = vmatpush1.msra.mxu0 0.0
        %597 = vmatprep.subr.mxu0 0.0
        %598 = vmatpush1.msra.mxu0 0.0
        %599 = vmatprep.subr.mxu0 0.0
        %600 = vmatpush1.msra.mxu0 0.0
        %601 = vmatprep.subr.mxu0 0.0
        %602 = vmatpush1.msra.mxu0 0.0
        %603 = vmatprep.subr.mxu0 0.0
        %604 = vmatpush1.msra.mxu0 0.0
        %605 = vmatprep.subr.mxu0 0.0
        %606 = vmatpush1.msra.mxu0 0.0
        %607 = vmatprep.subr.mxu0 0.0
        %608 = vmatpush1.msra.mxu0 0.0
        %609 = vmatprep.subr.mxu0 0.0
        %610 = vmatpush1.msra.mxu0 0.0
        %611 = vmatprep.subr.mxu0 0.0
        %612 = vmatpush1.msra.mxu0 0.0
        %613 = vmatprep.subr.mxu0 0.0
        %614 = vmatpush1.msra.mxu0 0.0
        %615 = vmatprep.subr.mxu0 0.0
        %616 = vmatpush1.msra.mxu0 0.0
        %617 = vmatprep.subr.mxu0 0.0
        %618 = vmatpush1.msra.mxu0 0.0
        %619 = vmatprep.subr.mxu0 0.0
        %620 = vmatpush1.msra.mxu0 0.0
        %621 = vmatprep.subr.mxu0 0.0
        %622 = vmatpush1.msra.mxu0 0.0
        %623 = vmatprep.subr.mxu0 0.0
        %624 = vmatpush1.msra.mxu0 0.0
        %625 = vmatprep.subr.mxu0 0.0
        %626 = vmatpush1.msra.mxu0 0.0
        %627 = vmatprep.subr.mxu0 0.0
        %628 = vmatpush1.msra.mxu0 0.0
        %629 = vmatprep.subr.mxu0 0.0
        %630 = vmatpush1.msra.mxu0 0.0
        %631 = vmatprep.subr.mxu0 0.0
        %632 = vmatpush1.msra.mxu0 0.0
        %633 = vmatprep.subr.mxu0 0.0
        %634 = vmatpush1.msra.mxu0 0.0
        %635 = vmatprep.subr.mxu0 0.0
        %636 = vmatpush1.msra.mxu0 0.0
        %637 = vmatprep.subr.mxu0 0.0
        %638 = vmatpush1.msra.mxu0 0.0
        %639 = vmatprep.subr.mxu0 0.0
        %640 = vmatpush1.msra.mxu0 0.0
        %641 = vmatprep.subr.mxu0 0.0
        %642 = vmatpush1.msra.mxu0 0.0
        %643 = vmatprep.subr.mxu0 0.0
        %644 = vmatpush1.msra.mxu0 0.0
        %645 = vmatprep.subr.mxu0 0.0
        %646 = vmatpush1.msra.mxu0 0.0
        %647 = vmatprep.mubr.f32.mxu0 0.0
        %v648 = vand.u32 %v202, 4294901760
        %649 = vmatmul.mubr.f32.gmra.mrb[0].mxu0 %v648
        %v650 = vpop.f32.mrb[0].mxu0
        %v651 = vadd.f32 %v579, %v650
        %v652 = vpop.f32.mrb[0].mxu0
        %653 = vdwg.mxu0
        %654 = vst [vmem:[%s183] sm:$0xff] %v651
        %s655 = sand.u32 %s109, 1
        %s656 = scalar_lea.sflag [#allocation3], %s655
        %s657 = sand.u32 %s109, 1
        %s658 = smul.addr %s657, 8
        %s659 = scalar_lea.vmem [#allocation2], %s658
        // Predicated region
        $region33: #{tpu_custom_call.1} parent=31 // pred_check
          %p660 = pneg %p119
        $region34: #{tpu_custom_call.1} parent=31 // pred_check_branch
          %662 = sbr.rel (%p660) target = $region36
        $region35: #{tpu_custom_call.1} parent=31 // pred_region
          %s664 = ssub.s32 128, 128
          %665 = vsyncadd %s656, %s664
          %s666 = sadd.s32 %s22, %s21
          %s667 = smul.addr %s666, 128
          %s668 = scalar_lea.hbm %s3, %s667
          %s670 = sshll.u32 %s659, 4
          %s671 = int_to_ptr.vmem [resolvable:$true] %s670
          %673 = dma.vmem_to_hbm [thread:$0]  %s671, 128, %s668, %s656
        $region36: #{tpu_custom_call.1} parent=31 // pred_fallthru
          _
      $region32: #{tpu_custom_call.1} parent=5 // pred_fallthru
        _
      %p674 = scmp.le.s32.totalorder 2, %s12
      // Predicated region
      $region37: #{tpu_custom_call.1} parent=5 // pred_check
        %p675 = pneg %p674
      $region38: #{tpu_custom_call.1} parent=5 // pred_check_branch
        %677 = sbr.rel (%p675) target = $region40
      $region39: #{tpu_custom_call.1} parent=5 // pred_region
        %s678 = ssub.s32 %s12, 2
        // Predicated region
        $region41: #{tpu_custom_call.1} parent=39 // pred_check
          %p679 = pneg %p125
        $region42: #{tpu_custom_call.1} parent=39 // pred_check_branch
          %681 = sbr.rel (%p679) target = $region44
        $region43: #{tpu_custom_call.1} parent=39 // pred_region
          %s682 = sand.u32 %s110, 1
          %s683 = scalar_lea.sflag [#allocation3], %s682
          %s684 = sand.u32 %s110, 1
          %s685 = smul.addr %s684, 8
          %s686 = scalar_lea.vmem [#allocation2], %s685
          %687 = dma.done %s683, 128
        $region44: #{tpu_custom_call.1} parent=39 // pred_fallthru
          _
      $region40: #{tpu_custom_call.1} parent=5 // pred_fallthru
        _
    $region6: #{tpu_custom_call.1} parent=1 // loop_footer
      %s16 = sadd.s32 1, %s12
    $region7: #{tpu_custom_call.1} parent=1 // loop_footer_branch
      %11 = sbr.rel target = $region3
    $region8: #{tpu_custom_call.1} parent=1 // loop_exit
      _
    %688 = vsyncpa [#allocation3], 1
    %s689 = scalar_lea.sflag [#allocation3], 1
    %690 = vsyncpa %s689, 1

</llo_original>
